<compile_context>
chip_gen: v5e
topology: v5e:2x2
jax: 0.10.0
libtpu: 0.0.40
codegen_flags: <defaults>
</compile_context>

<pallas_src>
import functools
import math

import jax
import jax.numpy as jnp
from jax import lax
from jax.experimental import pallas as pl
from jax.experimental.pallas import tpu as pltpu

EPS = 1e-5


def _double_conv_kernel(Wdim, x_ref, w1_ref, m1_ref, g1_ref, b1_ref,
                        w2_ref, m2_ref, g2_ref, b2_ref,
                        out_ref, xpad_ref, ypad_ref):
    # x_ref:   (N, H, W*Cin_pad)           bf16
    # w1_ref:  (3*W*Cin_pad, W*Cmid)       bf16   K-stacked block-banded conv matrices
    # w2_ref:  (3*W*Cmid,    W*Cout)       bf16
    # m1/m2:   (W*C, W*C)                  f32    channel-grouping matrices (i%C == j%C)
    # g/b:     (1, W*C)                    f32    gamma / beta tiled to the lane pattern
    # out:     (N*H, W*Cout)               bf16
    # xpad/ypad: (N, H+2, W*C)             bf16   H-halo staging scratch
    N, H, WCin = x_ref.shape
    WCmid = w1_ref.shape[1]
    WCout = w2_ref.shape[1]
    NH = N * H
    inv_cnt = 1.0 / float(NH * Wdim)          # per-channel element count N*H*W

    # ---- stage x (bf16, as-is) into the H-halo scratch; zero only the two halo rows ----
    xpad_ref[:, 1:H + 1, :] = x_ref[...]
    xpad_ref[:, 0:1, :] = jnp.zeros((N, 1, WCin), jnp.bfloat16)
    xpad_ref[:, H + 1:H + 2, :] = jnp.zeros((N, 1, WCin), jnp.bfloat16)

    # ---- conv1: single MXU matmul, the 3 vertical taps concatenated along K ----
    xcat = jnp.concatenate(
        [xpad_ref[:, kh:kh + H, :].reshape(NH, WCin) for kh in range(3)], axis=1)
    acc1 = jnp.dot(xcat, w1_ref[...], preferred_element_type=jnp.float32)

    # ---- BatchNorm1 (batch stats, single pass) + ReLU ----
    # Row-reduce first (XLU), then a tiny (1,WC)@(WC,WC) grouping matmul.  Kept in f32:
    # after the reorder it is negligible MXU work, and f32 keeps the stats exact.
    s1 = jnp.sum(acc1, axis=0, keepdims=True)
    q1 = jnp.sum(acc1 * acc1, axis=0, keepdims=True)
    mean1 = jnp.dot(s1, m1_ref[...], preferred_element_type=jnp.float32) * inv_cnt
    ex2_1 = jnp.dot(q1, m1_ref[...], preferred_element_type=jnp.float32) * inv_cnt
    var1 = jnp.maximum(ex2_1 - mean1 * mean1, 0.0)     # guard E[x^2]-mean^2 cancellation
    y1 = (acc1 - mean1) * lax.rsqrt(var1 + EPS) * g1_ref[...] + b1_ref[...]
    y1 = jnp.maximum(y1, 0.0).astype(jnp.bfloat16)     # single f32->bf16 cast

    # ---- stage y1 into the bf16 H-halo scratch for conv2 ----
    ypad_ref[:, 1:H + 1, :] = y1.reshape(N, H, WCmid)
    ypad_ref[:, 0:1, :] = jnp.zeros((N, 1, WCmid), jnp.bfloat16)
    ypad_ref[:, H + 1:H + 2, :] = jnp.zeros((N, 1, WCmid), jnp.bfloat16)

    # ---- conv2: single MXU matmul, K = 3*W*Cmid ----
    ycat = jnp.concatenate(
        [ypad_ref[:, kh:kh + H, :].reshape(NH, WCmid) for kh in range(3)], axis=1)
    acc2 = jnp.dot(ycat, w2_ref[...], preferred_element_type=jnp.float32)

    # ---- BatchNorm2 + ReLU ----
    s2 = jnp.sum(acc2, axis=0, keepdims=True)
    q2 = jnp.sum(acc2 * acc2, axis=0, keepdims=True)
    mean2 = jnp.dot(s2, m2_ref[...], preferred_element_type=jnp.float32) * inv_cnt
    ex2_2 = jnp.dot(q2, m2_ref[...], preferred_element_type=jnp.float32) * inv_cnt
    var2 = jnp.maximum(ex2_2 - mean2 * mean2, 0.0)
    z = (acc2 - mean2) * lax.rsqrt(var2 + EPS) * g2_ref[...] + b2_ref[...]
    out_ref[...] = jnp.maximum(z, 0.0).astype(out_ref.dtype)


def _banded_weights(w_oihw, Wdim):
    """(Cout, Cin, 3, 3) -> (3*Wdim*Cin, Wdim*Cout) K-stacked block-banded conv matrices.

    Band kh: B[kh][wi*Cin+ci, wo*Cout+co] = w[co, ci, kh, wi-wo+1] if 0 <= wi-wo+1 <= 2
    else 0, so a SAME-padded 3x3 conv over one image row becomes a single
    (W*Cin)@(W*Cin, W*Cout) matmul per vertical tap; stacking the 3 taps along rows lets
    the kernel do ONE matmul with K = 3*W*Cin.
    """
    Cout, Cin, KH, KW = w_oihw.shape
    w_hwio = jnp.transpose(w_oihw, (2, 3, 1, 0)).astype(jnp.float32)   # (KH, KW, Cin, Cout)
    bands = []
    for kh in range(KH):
        Bk = jnp.zeros((Wdim * Cin, Wdim * Cout), jnp.float32)
        for kw in range(KW):
            # S[wi, wo] = 1 iff wi == wo + kw - 1
            S = jnp.eye(Wdim, k=1 - kw, dtype=jnp.float32)
            blk = jnp.einsum("ab,cd->acbd", S, w_hwio[kh, kw])         # (W, Cin, W, Cout)
            Bk = Bk + blk.reshape(Wdim * Cin, Wdim * Cout)
        bands.append(Bk)
    return jnp.concatenate(bands, axis=0)                              # (3*W*Cin, W*Cout)


def _group_matrix(Wdim, C):
    """(W*C, W*C) matrix M with M[i, j] = 1 if i % C == j % C (per-channel group sum)."""
    ch = jnp.arange(Wdim * C) % C
    return (ch[:, None] == ch[None, :]).astype(jnp.float32)


def _round_up(v, m):
    return -(-v // m) * m


def make_double_conv_params(w1_oihw, gamma1, beta1, w2_oihw, gamma2, beta2, Wdim):
    """One-time parameter packing -- hoisted out of the per-call (jitted) path."""
    Cmid, Cin = w1_oihw.shape[0], w1_oihw.shape[1]
    Cout = w2_oihw.shape[0]
    # This toy-size kernel assumes W*Cmid and W*Cout are multiples of 128 (lane-dense).
    assert (Wdim * Cmid) % 128 == 0 and (Wdim * Cout) % 128 == 0

    # Pad Cin so W*Cin_pad is a multiple of 128 -> lane-aligned input, staging and K-concat.
    unit = 128 // math.gcd(Wdim, 128)
    Cin_pad = _round_up(Cin, unit)
    w1p = jnp.pad(w1_oihw, ((0, 0), (0, Cin_pad - Cin), (0, 0), (0, 0)))

    w1 = _banded_weights(w1p, Wdim).astype(jnp.bfloat16)      # (3*W*Cin_pad, W*Cmid)
    w2 = _banded_weights(w2_oihw, Wdim).astype(jnp.bfloat16)  # (3*W*Cmid,   W*Cout)
    m1 = _group_matrix(Wdim, Cmid)                            # f32: keeps BN stats exact
    m2 = _group_matrix(Wdim, Cout)
    g1 = jnp.tile(gamma1.astype(jnp.float32), Wdim).reshape(1, Wdim * Cmid)
    b1 = jnp.tile(beta1.astype(jnp.float32), Wdim).reshape(1, Wdim * Cmid)
    g2 = jnp.tile(gamma2.astype(jnp.float32), Wdim).reshape(1, Wdim * Cout)
    b2 = jnp.tile(beta2.astype(jnp.float32), Wdim).reshape(1, Wdim * Cout)
    return dict(w1=w1, m1=m1, g1=g1, b1=b1, w2=w2, m2=m2, g2=g2, b2=b2)


@jax.jit
def double_conv_nhwc(params, x_nhwc):
    """Production path: (N, H, W, Cin) -> (N, H, W, Cout) bf16, NHWC kept between layers."""
    N, H, W, Cin = x_nhwc.shape
    WCin_pad = params["w1"].shape[0] // 3
    WCmid = params["w1"].shape[1]
    WCout = params["w2"].shape[1]
    Cin_pad = WCin_pad // W
    Cout = WCout // W

    if Cin_pad > Cin:
        x_nhwc = jnp.pad(x_nhwc, ((0, 0), (0, 0), (0, 0), (0, Cin_pad - Cin)))
    x = x_nhwc.reshape(N, H, WCin_pad).astype(jnp.bfloat16)

    full = lambda shape: pl.BlockSpec(shape, lambda i: (0,) * len(shape))

    out = pl.pallas_call(
        functools.partial(_double_conv_kernel, W),
        out_shape=jax.ShapeDtypeStruct((N * H, WCout), jnp.bfloat16),
        grid_spec=pltpu.PrefetchScalarGridSpec(
            num_scalar_prefetch=0,
            # TODO(synk): real sizes: leading 'parallel' axis over N / H row-blocks
            # (both v7x TCs) + two-phase BN reduction; re-derive tiles for 64 MiB VMEM.
            grid=(1,),
            in_specs=[
                full(x.shape),
                full(params["w1"].shape), full(params["m1"].shape),
                full(params["g1"].shape), full(params["b1"].shape),
                full(params["w2"].shape), full(params["m2"].shape),
                full(params["g2"].shape), full(params["b2"].shape),
            ],
            out_specs=full((N * H, WCout)),
            scratch_shapes=[
                pltpu.VMEM((N, H + 2, WCin_pad), jnp.bfloat16),   # x halo staging (bf16)
                pltpu.VMEM((N, H + 2, WCmid), jnp.bfloat16),      # y1 halo staging (bf16)
            ],
        ),
        compiler_params=pltpu.CompilerParams(dimension_semantics=("arbitrary",)),
    )(x, params["w1"], params["m1"], params["g1"], params["b1"],
      params["w2"], params["m2"], params["g2"], params["b2"])

    return out.reshape(N, H, W, Cout)


@jax.jit
def double_conv_nchw(params, x_nchw):
    """NCHW adapter matching the PyTorch module interface (f32 output for checking)."""
    y = double_conv_nhwc(params, jnp.transpose(x_nchw, (0, 2, 3, 1)))
    return jnp.transpose(y, (0, 3, 1, 2)).astype(jnp.float32)


def _reference(x_nchw, w1_oihw, gamma1, beta1, w2_oihw, gamma2, beta2):
    """Plain-JAX f32 reference matching PyTorch DoubleConv.forward (training-mode BN)."""
    def conv(x, w):
        return lax.conv_general_dilated(
            x, w, window_strides=(1, 1), padding="SAME",
            dimension_numbers=("NCHW", "OIHW", "NCHW"))

    def bn_relu(y, g, b):
        mean = jnp.mean(y, axis=(0, 2, 3), keepdims=True)
        var = jnp.mean((y - mean) ** 2, axis=(0, 2, 3), keepdims=True)
        yhat = (y - mean) * lax.rsqrt(var + EPS)
        yhat = yhat * g.reshape(1, -1, 1, 1) + b.reshape(1, -1, 1, 1)
        return jnp.maximum(yhat, 0.0)

    y = bn_relu(conv(x_nchw, w1_oihw), gamma1, beta1)
    return bn_relu(conv(y, w2_oihw), gamma2, beta2)


if __name__ == "__main__":
    # DoubleConv(in_channels=4, out_channels=8) -> mid_channels=8
    N, Cin, H, W = 2, 4, 16, 16
    Cmid, Cout = 8, 8

    key = jax.random.PRNGKey(0)
    kx, kw1, kw2 = jax.random.split(key, 3)

    x = jax.random.normal(kx, (N, Cin, H, W), dtype=jnp.float32)

    # kaiming_normal_(mode='fan_out', nonlinearity='relu'): std = sqrt(2 / (Cout*kh*kw))
    std1 = (2.0 / (Cmid * 3 * 3)) ** 0.5
    std2 = (2.0 / (Cout * 3 * 3)) ** 0.5
    w1 = jax.random.normal(kw1, (Cmid, Cin, 3, 3), dtype=jnp.float32) * std1
    w2 = jax.random.normal(kw2, (Cout, Cmid, 3, 3), dtype=jnp.float32) * std2

    # BatchNorm affine params per the module's init: weight=1, bias=0
    gamma1 = jnp.ones((Cmid,), jnp.float32)
    beta1 = jnp.zeros((Cmid,), jnp.float32)
    gamma2 = jnp.ones((Cout,), jnp.float32)
    beta2 = jnp.zeros((Cout,), jnp.float32)

    # One-time parameter packing (band matrices, group matrices, tiled gamma/beta).
    params = make_double_conv_params(w1, gamma1, beta1, w2, gamma2, beta2, W)

    out = jax.block_until_ready(double_conv_nchw(params, x))
    ref = jax.block_until_ready(_reference(x, w1, gamma1, beta1, w2, gamma2, beta2))

    assert out.shape == (N, Cout, H, W)
    # bf16 MXU operands AND bf16 kernel output (per the perf review) vs the f32 reference.
    assert jnp.allclose(out, ref, atol=3e-2, rtol=3e-2), float(jnp.max(jnp.abs(out - ref)))

    print("KERNEL_OK")
</pallas_src>

<mosaic_0001>
module attributes {stable_mosaic.version = 11 : i64} {
  func.func @_double_conv_kernel(%arg0: i32, %arg1: memref<2x16x128xbf16, #tpu.memory_space<vmem>>, %arg2: memref<384x128xbf16, #tpu.memory_space<vmem>>, %arg3: memref<128x128xf32, #tpu.memory_space<vmem>>, %arg4: memref<1x128xf32, #tpu.memory_space<vmem>>, %arg5: memref<1x128xf32, #tpu.memory_space<vmem>>, %arg6: memref<384x128xbf16, #tpu.memory_space<vmem>>, %arg7: memref<128x128xf32, #tpu.memory_space<vmem>>, %arg8: memref<1x128xf32, #tpu.memory_space<vmem>>, %arg9: memref<1x128xf32, #tpu.memory_space<vmem>>, %arg10: memref<32x128xbf16, #tpu.memory_space<vmem>>, %arg11: memref<2x18x128xbf16, #tpu.memory_space<vmem>>, %arg12: memref<2x18x128xbf16, #tpu.memory_space<vmem>>) attributes {dimension_semantics = [#tpu.dimension_semantics<arbitrary>], iteration_bounds = array<i64: 1>, scalar_prefetch = 0 : i64, scratch_operands = 2 : i64, tpu.core_type = #tpu.core_type<tc>, window_params = [{pipeline_mode = #tpu.pipeline_mode<synchronous>, transform_indices = @transform_0, window_bounds = array<i64: 2, 16, 128>}, {pipeline_mode = #tpu.pipeline_mode<synchronous>, transform_indices = @transform_1, window_bounds = array<i64: 384, 128>}, {pipeline_mode = #tpu.pipeline_mode<synchronous>, transform_indices = @transform_2, window_bounds = array<i64: 128, 128>}, {pipeline_mode = #tpu.pipeline_mode<synchronous>, transform_indices = @transform_3, window_bounds = array<i64: 1, 128>}, {pipeline_mode = #tpu.pipeline_mode<synchronous>, transform_indices = @transform_4, window_bounds = array<i64: 1, 128>}, {pipeline_mode = #tpu.pipeline_mode<synchronous>, transform_indices = @transform_5, window_bounds = array<i64: 384, 128>}, {pipeline_mode = #tpu.pipeline_mode<synchronous>, transform_indices = @transform_6, window_bounds = array<i64: 128, 128>}, {pipeline_mode = #tpu.pipeline_mode<synchronous>, transform_indices = @transform_7, window_bounds = array<i64: 1, 128>}, {pipeline_mode = #tpu.pipeline_mode<synchronous>, transform_indices = @transform_8, window_bounds = array<i64: 1, 128>}, {pipeline_mode = #tpu.pipeline_mode<synchronous>, transform_indices = @transform_9, window_bounds = array<i64: 32, 128>}]} {
    %c0 = arith.constant 0 : index
    %c0_0 = arith.constant 0 : index
    %c0_1 = arith.constant 0 : index
    %0 = vector.load %arg1[%c0, %c0_0, %c0_1] : memref<2x16x128xbf16, #tpu.memory_space<vmem>>, vector<2x16x128xbf16>
    %c0_2 = arith.constant 0 : index
    %c1 = arith.constant 1 : index
    %c0_3 = arith.constant 0 : index
    %1 = vector.load %arg11[%c0_2, %c1, %c0_3] : memref<2x18x128xbf16, #tpu.memory_space<vmem>>, vector<2x16x128xbf16>
    tpu.vector_store %arg11[%c0_2, %c1, %c0_3], %0 {strides = array<i32>} : memref<2x18x128xbf16, #tpu.memory_space<vmem>>, vector<2x16x128xbf16>,
    %cst = arith.constant 0.000000e+00 : bf16
    %2 = vector.broadcast %cst : bf16 to vector<2x1x128xbf16>
    %c0_4 = arith.constant 0 : index
    %c0_5 = arith.constant 0 : index
    %c0_6 = arith.constant 0 : index
    %3 = vector.load %arg11[%c0_4, %c0_5, %c0_6] : memref<2x18x128xbf16, #tpu.memory_space<vmem>>, vector<2x1x128xbf16>
    tpu.vector_store %arg11[%c0_4, %c0_5, %c0_6], %2 {strides = array<i32>} : memref<2x18x128xbf16, #tpu.memory_space<vmem>>, vector<2x1x128xbf16>,
    %cst_7 = arith.constant 0.000000e+00 : bf16
    %4 = vector.broadcast %cst_7 : bf16 to vector<2x1x128xbf16>
    %c0_8 = arith.constant 0 : index
    %c17 = arith.constant 17 : index
    %c0_9 = arith.constant 0 : index
    %5 = vector.load %arg11[%c0_8, %c17, %c0_9] : memref<2x18x128xbf16, #tpu.memory_space<vmem>>, vector<2x1x128xbf16>
    tpu.vector_store %arg11[%c0_8, %c17, %c0_9], %4 {strides = array<i32>} : memref<2x18x128xbf16, #tpu.memory_space<vmem>>, vector<2x1x128xbf16>,
    %c0_10 = arith.constant 0 : index
    %c0_11 = arith.constant 0 : index
    %c0_12 = arith.constant 0 : index
    %6 = vector.load %arg11[%c0_10, %c0_11, %c0_12] : memref<2x18x128xbf16, #tpu.memory_space<vmem>>, vector<2x16x128xbf16>
    %7 = vector.shape_cast %6 : vector<2x16x128xbf16> to vector<32x128xbf16>
    %c0_13 = arith.constant 0 : index
    %c1_14 = arith.constant 1 : index
    %c0_15 = arith.constant 0 : index
    %8 = vector.load %arg11[%c0_13, %c1_14, %c0_15] : memref<2x18x128xbf16, #tpu.memory_space<vmem>>, vector<2x16x128xbf16>
    %9 = vector.shape_cast %8 : vector<2x16x128xbf16> to vector<32x128xbf16>
    %c0_16 = arith.constant 0 : index
    %c2 = arith.constant 2 : index
    %c0_17 = arith.constant 0 : index
    %10 = vector.load %arg11[%c0_16, %c2, %c0_17] : memref<2x18x128xbf16, #tpu.memory_space<vmem>>, vector<2x16x128xbf16>
    %11 = vector.shape_cast %10 : vector<2x16x128xbf16> to vector<32x128xbf16>
    %12 = tpu.concatenate %7, %9, %11 in 1 : vector<32x128xbf16>, vector<32x128xbf16>, vector<32x128xbf16> -> vector<32x384xbf16>
    %c0_18 = arith.constant 0 : index
    %c0_19 = arith.constant 0 : index
    %13 = vector.load %arg2[%c0_18, %c0_19] : memref<384x128xbf16, #tpu.memory_space<vmem>>, vector<384x128xbf16>
    %cst_20 = arith.constant dense<0.000000e+00> : vector<32x128xf32>
    %14 = tpu.matmul %12, %13, %cst_20 {dimension_numbers = #tpu.dot_dimension_numbers<[1], [0], [0], [1], [0, 0, 1, 1], [], []>} : vector<32x384xbf16>, vector<384x128xbf16>, vector<32x128xf32> -> vector<32x128xf32>
    %cst_21 = arith.constant dense<0.000000e+00> : vector<128xf32>
    %15 = vector.multi_reduction <add>, %14, %cst_21 [0] : vector<32x128xf32> to vector<128xf32>
    %16 = vector.shape_cast %15 : vector<128xf32> to vector<1x128xf32>
    %17 = arith.mulf %14, %14 : vector<32x128xf32>
    %cst_22 = arith.constant dense<0.000000e+00> : vector<128xf32>
    %18 = vector.multi_reduction <add>, %17, %cst_22 [0] : vector<32x128xf32> to vector<128xf32>
    %19 = vector.shape_cast %18 : vector<128xf32> to vector<1x128xf32>
    %c0_23 = arith.constant 0 : index
    %c0_24 = arith.constant 0 : index
    %20 = vector.load %arg3[%c0_23, %c0_24] : memref<128x128xf32, #tpu.memory_space<vmem>>, vector<128x128xf32>
    %cst_25 = arith.constant dense<0.000000e+00> : vector<1x128xf32>
    %21 = tpu.matmul %16, %20, %cst_25 {dimension_numbers = #tpu.dot_dimension_numbers<[1], [0], [0], [1], [0, 0, 1, 1], [], []>} : vector<1x128xf32>, vector<128x128xf32>, vector<1x128xf32> -> vector<1x128xf32>
    %cst_26 = arith.constant 0.001953125 : f32
    %22 = vector.broadcast %cst_26 : f32 to vector<1x128xf32>
    %23 = arith.mulf %21, %22 : vector<1x128xf32>
    %c0_27 = arith.constant 0 : index
    %c0_28 = arith.constant 0 : index
    %24 = vector.load %arg3[%c0_27, %c0_28] : memref<128x128xf32, #tpu.memory_space<vmem>>, vector<128x128xf32>
    %cst_29 = arith.constant dense<0.000000e+00> : vector<1x128xf32>
    %25 = tpu.matmul %19, %24, %cst_29 {dimension_numbers = #tpu.dot_dimension_numbers<[1], [0], [0], [1], [0, 0, 1, 1], [], []>} : vector<1x128xf32>, vector<128x128xf32>, vector<1x128xf32> -> vector<1x128xf32>
    %cst_30 = arith.constant 0.001953125 : f32
    %26 = vector.broadcast %cst_30 : f32 to vector<1x128xf32>
    %27 = arith.mulf %25, %26 : vector<1x128xf32>
    %28 = arith.mulf %23, %23 : vector<1x128xf32>
    %29 = arith.subf %27, %28 : vector<1x128xf32>
    %cst_31 = arith.constant 0.000000e+00 : f32
    %30 = vector.broadcast %cst_31 : f32 to vector<1x128xf32>
    %31 = arith.maximumf %29, %30 : vector<1x128xf32>
    %32 = vector.broadcast %23 : vector<1x128xf32> to vector<32x128xf32>
    %33 = arith.subf %14, %32 : vector<32x128xf32>
    %cst_32 = arith.constant 9.99999974E-6 : f32
    %34 = vector.broadcast %cst_32 : f32 to vector<1x128xf32>
    %35 = arith.addf %31, %34 : vector<1x128xf32>
    %36 = math.rsqrt %35 : vector<1x128xf32>
    %37 = vector.broadcast %36 : vector<1x128xf32> to vector<32x128xf32>
    %38 = arith.mulf %33, %37 : vector<32x128xf32>
    %c0_33 = arith.constant 0 : index
    %c0_34 = arith.constant 0 : index
    %39 = vector.load %arg4[%c0_33, %c0_34] : memref<1x128xf32, #tpu.memory_space<vmem>>, vector<1x128xf32>
    %40 = vector.broadcast %39 : vector<1x128xf32> to vector<32x128xf32>
    %41 = arith.mulf %38, %40 : vector<32x128xf32>
    %c0_35 = arith.constant 0 : index
    %c0_36 = arith.constant 0 : index
    %42 = vector.load %arg5[%c0_35, %c0_36] : memref<1x128xf32, #tpu.memory_space<vmem>>, vector<1x128xf32>
    %43 = vector.broadcast %42 : vector<1x128xf32> to vector<32x128xf32>
    %44 = arith.addf %41, %43 : vector<32x128xf32>
    %cst_37 = arith.constant 0.000000e+00 : f32
    %45 = vector.broadcast %cst_37 : f32 to vector<32x128xf32>
    %46 = arith.maximumf %44, %45 : vector<32x128xf32>
    %47 = arith.truncf %46 : vector<32x128xf32> to vector<32x128xbf16>
    %48 = vector.shape_cast %47 : vector<32x128xbf16> to vector<2x16x128xbf16>
    %c0_38 = arith.constant 0 : index
    %c1_39 = arith.constant 1 : index
    %c0_40 = arith.constant 0 : index
    %49 = vector.load %arg12[%c0_38, %c1_39, %c0_40] : memref<2x18x128xbf16, #tpu.memory_space<vmem>>, vector<2x16x128xbf16>
    tpu.vector_store %arg12[%c0_38, %c1_39, %c0_40], %48 {strides = array<i32>} : memref<2x18x128xbf16, #tpu.memory_space<vmem>>, vector<2x16x128xbf16>,
    %cst_41 = arith.constant 0.000000e+00 : bf16
    %50 = vector.broadcast %cst_41 : bf16 to vector<2x1x128xbf16>
    %c0_42 = arith.constant 0 : index
    %c0_43 = arith.constant 0 : index
    %c0_44 = arith.constant 0 : index
    %51 = vector.load %arg12[%c0_42, %c0_43, %c0_44] : memref<2x18x128xbf16, #tpu.memory_space<vmem>>, vector<2x1x128xbf16>
    tpu.vector_store %arg12[%c0_42, %c0_43, %c0_44], %50 {strides = array<i32>} : memref<2x18x128xbf16, #tpu.memory_space<vmem>>, vector<2x1x128xbf16>,
    %cst_45 = arith.constant 0.000000e+00 : bf16
    %52 = vector.broadcast %cst_45 : bf16 to vector<2x1x128xbf16>
    %c0_46 = arith.constant 0 : index
    %c17_47 = arith.constant 17 : index
    %c0_48 = arith.constant 0 : index
    %53 = vector.load %arg12[%c0_46, %c17_47, %c0_48] : memref<2x18x128xbf16, #tpu.memory_space<vmem>>, vector<2x1x128xbf16>
    tpu.vector_store %arg12[%c0_46, %c17_47, %c0_48], %52 {strides = array<i32>} : memref<2x18x128xbf16, #tpu.memory_space<vmem>>, vector<2x1x128xbf16>,
    %c0_49 = arith.constant 0 : index
    %c0_50 = arith.constant 0 : index
    %c0_51 = arith.constant 0 : index
    %54 = vector.load %arg12[%c0_49, %c0_50, %c0_51] : memref<2x18x128xbf16, #tpu.memory_space<vmem>>, vector<2x16x128xbf16>
    %55 = vector.shape_cast %54 : vector<2x16x128xbf16> to vector<32x128xbf16>
    %c0_52 = arith.constant 0 : index
    %c1_53 = arith.constant 1 : index
    %c0_54 = arith.constant 0 : index
    %56 = vector.load %arg12[%c0_52, %c1_53, %c0_54] : memref<2x18x128xbf16, #tpu.memory_space<vmem>>, vector<2x16x128xbf16>
    %57 = vector.shape_cast %56 : vector<2x16x128xbf16> to vector<32x128xbf16>
    %c0_55 = arith.constant 0 : index
    %c2_56 = arith.constant 2 : index
    %c0_57 = arith.constant 0 : index
    %58 = vector.load %arg12[%c0_55, %c2_56, %c0_57] : memref<2x18x128xbf16, #tpu.memory_space<vmem>>, vector<2x16x128xbf16>
    %59 = vector.shape_cast %58 : vector<2x16x128xbf16> to vector<32x128xbf16>
    %60 = tpu.concatenate %55, %57, %59 in 1 : vector<32x128xbf16>, vector<32x128xbf16>, vector<32x128xbf16> -> vector<32x384xbf16>
    %c0_58 = arith.constant 0 : index
    %c0_59 = arith.constant 0 : index
    %61 = vector.load %arg6[%c0_58, %c0_59] : memref<384x128xbf16, #tpu.memory_space<vmem>>, vector<384x128xbf16>
    %cst_60 = arith.constant dense<0.000000e+00> : vector<32x128xf32>
    %62 = tpu.matmul %60, %61, %cst_60 {dimension_numbers = #tpu.dot_dimension_numbers<[1], [0], [0], [1], [0, 0, 1, 1], [], []>} : vector<32x384xbf16>, vector<384x128xbf16>, vector<32x128xf32> -> vector<32x128xf32>
    %cst_61 = arith.constant dense<0.000000e+00> : vector<128xf32>
    %63 = vector.multi_reduction <add>, %62, %cst_61 [0] : vector<32x128xf32> to vector<128xf32>
    %64 = vector.shape_cast %63 : vector<128xf32> to vector<1x128xf32>
    %65 = arith.mulf %62, %62 : vector<32x128xf32>
    %cst_62 = arith.constant dense<0.000000e+00> : vector<128xf32>
    %66 = vector.multi_reduction <add>, %65, %cst_62 [0] : vector<32x128xf32> to vector<128xf32>
    %67 = vector.shape_cast %66 : vector<128xf32> to vector<1x128xf32>
    %c0_63 = arith.constant 0 : index
    %c0_64 = arith.constant 0 : index
    %68 = vector.load %arg7[%c0_63, %c0_64] : memref<128x128xf32, #tpu.memory_space<vmem>>, vector<128x128xf32>
    %cst_65 = arith.constant dense<0.000000e+00> : vector<1x128xf32>
    %69 = tpu.matmul %64, %68, %cst_65 {dimension_numbers = #tpu.dot_dimension_numbers<[1], [0], [0], [1], [0, 0, 1, 1], [], []>} : vector<1x128xf32>, vector<128x128xf32>, vector<1x128xf32> -> vector<1x128xf32>
    %cst_66 = arith.constant 0.001953125 : f32
    %70 = vector.broadcast %cst_66 : f32 to vector<1x128xf32>
    %71 = arith.mulf %69, %70 : vector<1x128xf32>
    %c0_67 = arith.constant 0 : index
    %c0_68 = arith.constant 0 : index
    %72 = vector.load %arg7[%c0_67, %c0_68] : memref<128x128xf32, #tpu.memory_space<vmem>>, vector<128x128xf32>
    %cst_69 = arith.constant dense<0.000000e+00> : vector<1x128xf32>
    %73 = tpu.matmul %67, %72, %cst_69 {dimension_numbers = #tpu.dot_dimension_numbers<[1], [0], [0], [1], [0, 0, 1, 1], [], []>} : vector<1x128xf32>, vector<128x128xf32>, vector<1x128xf32> -> vector<1x128xf32>
    %cst_70 = arith.constant 0.001953125 : f32
    %74 = vector.broadcast %cst_70 : f32 to vector<1x128xf32>
    %75 = arith.mulf %73, %74 : vector<1x128xf32>
    %76 = arith.mulf %71, %71 : vector<1x128xf32>
    %77 = arith.subf %75, %76 : vector<1x128xf32>
    %cst_71 = arith.constant 0.000000e+00 : f32
    %78 = vector.broadcast %cst_71 : f32 to vector<1x128xf32>
    %79 = arith.maximumf %77, %78 : vector<1x128xf32>
    %80 = vector.broadcast %71 : vector<1x128xf32> to vector<32x128xf32>
    %81 = arith.subf %62, %80 : vector<32x128xf32>
    %cst_72 = arith.constant 9.99999974E-6 : f32
    %82 = vector.broadcast %cst_72 : f32 to vector<1x128xf32>
    %83 = arith.addf %79, %82 : vector<1x128xf32>
    %84 = math.rsqrt %83 : vector<1x128xf32>
    %85 = vector.broadcast %84 : vector<1x128xf32> to vector<32x128xf32>
    %86 = arith.mulf %81, %85 : vector<32x128xf32>
    %c0_73 = arith.constant 0 : index
    %c0_74 = arith.constant 0 : index
    %87 = vector.load %arg8[%c0_73, %c0_74] : memref<1x128xf32, #tpu.memory_space<vmem>>, vector<1x128xf32>
    %88 = vector.broadcast %87 : vector<1x128xf32> to vector<32x128xf32>
    %89 = arith.mulf %86, %88 : vector<32x128xf32>
    %c0_75 = arith.constant 0 : index
    %c0_76 = arith.constant 0 : index
    %90 = vector.load %arg9[%c0_75, %c0_76] : memref<1x128xf32, #tpu.memory_space<vmem>>, vector<1x128xf32>
    %91 = vector.broadcast %90 : vector<1x128xf32> to vector<32x128xf32>
    %92 = arith.addf %89, %91 : vector<32x128xf32>
    %cst_77 = arith.constant 0.000000e+00 : f32
    %93 = vector.broadcast %cst_77 : f32 to vector<32x128xf32>
    %94 = arith.maximumf %92, %93 : vector<32x128xf32>
    %95 = arith.truncf %94 : vector<32x128xf32> to vector<32x128xbf16>
    %c0_78 = arith.constant 0 : index
    %c0_79 = arith.constant 0 : index
    %96 = vector.load %arg10[%c0_78, %c0_79] : memref<32x128xbf16, #tpu.memory_space<vmem>>, vector<32x128xbf16>
    tpu.vector_store %arg10[%c0_78, %c0_79], %95 {strides = array<i32>} : memref<32x128xbf16, #tpu.memory_space<vmem>>, vector<32x128xbf16>,
    return
  }
  func.func @transform_0(%arg0: i32) -> (i32, i32, i32) {
    %c0_i32 = arith.constant 0 : i32
    %c0_i32_0 = arith.constant 0 : i32
    %c0_i32_1 = arith.constant 0 : i32
    %c0_i32_2 = arith.constant 0 : i32
    return %c0_i32, %c0_i32_0, %c0_i32_1 : i32, i32, i32
  }
  func.func @transform_1(%arg0: i32) -> (i32, i32) {
    %c0_i32 = arith.constant 0 : i32
    %c0_i32_0 = arith.constant 0 : i32
    %c0_i32_1 = arith.constant 0 : i32
    return %c0_i32, %c0_i32_0 : i32, i32
  }
  func.func @transform_2(%arg0: i32) -> (i32, i32) {
    %c0_i32 = arith.constant 0 : i32
    %c0_i32_0 = arith.constant 0 : i32
    %c0_i32_1 = arith.constant 0 : i32
    return %c0_i32, %c0_i32_0 : i32, i32
  }
  func.func @transform_3(%arg0: i32) -> (i32, i32) {
    %c0_i32 = arith.constant 0 : i32
    %c0_i32_0 = arith.constant 0 : i32
    %c0_i32_1 = arith.constant 0 : i32
    return %c0_i32, %c0_i32_0 : i32, i32
  }
  func.func @transform_4(%arg0: i32) -> (i32, i32) {
    %c0_i32 = arith.constant 0 : i32
    %c0_i32_0 = arith.constant 0 : i32
    %c0_i32_1 = arith.constant 0 : i32
    return %c0_i32, %c0_i32_0 : i32, i32
  }
  func.func @transform_5(%arg0: i32) -> (i32, i32) {
    %c0_i32 = arith.constant 0 : i32
    %c0_i32_0 = arith.constant 0 : i32
    %c0_i32_1 = arith.constant 0 : i32
    return %c0_i32, %c0_i32_0 : i32, i32
  }
  func.func @transform_6(%arg0: i32) -> (i32, i32) {
    %c0_i32 = arith.constant 0 : i32
    %c0_i32_0 = arith.constant 0 : i32
    %c0_i32_1 = arith.constant 0 : i32
    return %c0_i32, %c0_i32_0 : i32, i32
  }
  func.func @transform_7(%arg0: i32) -> (i32, i32) {
    %c0_i32 = arith.constant 0 : i32
    %c0_i32_0 = arith.constant 0 : i32
    %c0_i32_1 = arith.constant 0 : i32
    return %c0_i32, %c0_i32_0 : i32, i32
  }
  func.func @transform_8(%arg0: i32) -> (i32, i32) {
    %c0_i32 = arith.constant 0 : i32
    %c0_i32_0 = arith.constant 0 : i32
    %c0_i32_1 = arith.constant 0 : i32
    return %c0_i32, %c0_i32_0 : i32, i32
  }
  func.func @transform_9(%arg0: i32) -> (i32, i32) {
    %c0_i32 = arith.constant 0 : i32
    %c0_i32_0 = arith.constant 0 : i32
    %c0_i32_1 = arith.constant 0 : i32
    return %c0_i32, %c0_i32_0 : i32, i32
  }
}

</mosaic_0001>

<llo_original>
// kernel: double_conv_nhwc.1
$region0: #{double_conv_nhwc.1}
  #allocation0 [shape = 'u32[]', space=smem, size = 0x4, offset = 0x4, fixed_abs, tag = 'smem constant byte address 0x4 - core index']
  #allocation1 [shape = 'u32[72,128]{1,0:T(1,128)}', space=vmem, size = 0x9000, scoped, tag = 'internal scratch']
  #allocation2 [shape = 'bf16[2,18,128]{2,1,0:T(8,128)(2,1)}', space=vmem, size = 0x3000, scoped, tag = 'scratch operand']
  #allocation3 [shape = 'bf16[2,18,128]{2,1,0:T(8,128)(2,1)}', space=vmem, size = 0x3000, scoped, tag = 'scratch operand']
  %s0 = inlined_call_operand.vmem [shape: bf16[2,16,128], index: 0, kind: input, shape index: {}]
  %s1 = inlined_call_operand.vmem [shape: bf16[384,128], index: 1, kind: input, shape index: {}]
  %s2 = inlined_call_operand.vmem [shape: f32[128,128], index: 2, kind: input, shape index: {}]
  %s3 = inlined_call_operand.vmem [shape: f32[1,128], index: 3, kind: input, shape index: {}]
  %s4 = inlined_call_operand.vmem [shape: f32[1,128], index: 4, kind: input, shape index: {}]
  %s5 = inlined_call_operand.vmem [shape: bf16[384,128], index: 5, kind: input, shape index: {}]
  %s6 = inlined_call_operand.vmem [shape: f32[128,128], index: 6, kind: input, shape index: {}]
  %s7 = inlined_call_operand.vmem [shape: f32[1,128], index: 7, kind: input, shape index: {}]
  %s8 = inlined_call_operand.vmem [shape: f32[1,128], index: 8, kind: input, shape index: {}]
  %s9 = inlined_call_operand.vmem [shape: bf16[32,128], index: 9, kind: output, shape index: {}]
  %s10 = sld [smem:[#allocation0]]
  $region46: #{double_conv_nhwc.1} parent=0
    _
  %s12 = ssub.s32 1, %s10
  %s13 = scalar_select 0, %s12, %s10
  // Predicated region
  $region2: #{double_conv_nhwc.1} parent=0 // pred_check
    _
  $region3: #{double_conv_nhwc.1} parent=0 // pred_check_branch
    %15 = sbr.rel (0) target = $region5
  $region4: #{double_conv_nhwc.1} parent=0 // pred_region
    _
  $region5: #{double_conv_nhwc.1} parent=0 // pred_fallthru
    _
  // Predicated region
  $region6: #{double_conv_nhwc.1} parent=0 // pred_check
    _
  $region7: #{double_conv_nhwc.1} parent=0 // pred_check_branch
    %17 = sbr.rel (0) target = $region9
  $region8: #{double_conv_nhwc.1} parent=0 // pred_region
    _
  $region9: #{double_conv_nhwc.1} parent=0 // pred_fallthru
    _
  // Predicated region
  $region10: #{double_conv_nhwc.1} parent=0 // pred_check
    _
  $region11: #{double_conv_nhwc.1} parent=0 // pred_check_branch
    %19 = sbr.rel (0) target = $region13
  $region12: #{double_conv_nhwc.1} parent=0 // pred_region
    _
  $region13: #{double_conv_nhwc.1} parent=0 // pred_fallthru
    _
  // Predicated region
  $region14: #{double_conv_nhwc.1} parent=0 // pred_check
    _
  $region15: #{double_conv_nhwc.1} parent=0 // pred_check_branch
    %21 = sbr.rel (0) target = $region17
  $region16: #{double_conv_nhwc.1} parent=0 // pred_region
    _
  $region17: #{double_conv_nhwc.1} parent=0 // pred_fallthru
    _
  // Predicated region
  $region18: #{double_conv_nhwc.1} parent=0 // pred_check
    _
  $region19: #{double_conv_nhwc.1} parent=0 // pred_check_branch
    %23 = sbr.rel (0) target = $region21
  $region20: #{double_conv_nhwc.1} parent=0 // pred_region
    _
  $region21: #{double_conv_nhwc.1} parent=0 // pred_fallthru
    _
  // Predicated region
  $region22: #{double_conv_nhwc.1} parent=0 // pred_check
    _
  $region23: #{double_conv_nhwc.1} parent=0 // pred_check_branch
    %25 = sbr.rel (0) target = $region25
  $region24: #{double_conv_nhwc.1} parent=0 // pred_region
    _
  $region25: #{double_conv_nhwc.1} parent=0 // pred_fallthru
    _
  // Predicated region
  $region26: #{double_conv_nhwc.1} parent=0 // pred_check
    _
  $region27: #{double_conv_nhwc.1} parent=0 // pred_check_branch
    %27 = sbr.rel (0) target = $region29
  $region28: #{double_conv_nhwc.1} parent=0 // pred_region
    _
  $region29: #{double_conv_nhwc.1} parent=0 // pred_fallthru
    _
  // Predicated region
  $region30: #{double_conv_nhwc.1} parent=0 // pred_check
    _
  $region31: #{double_conv_nhwc.1} parent=0 // pred_check_branch
    %29 = sbr.rel (0) target = $region33
  $region32: #{double_conv_nhwc.1} parent=0 // pred_region
    _
  $region33: #{double_conv_nhwc.1} parent=0 // pred_fallthru
    _
  // Predicated region
  $region34: #{double_conv_nhwc.1} parent=0 // pred_check
    _
  $region35: #{double_conv_nhwc.1} parent=0 // pred_check_branch
    %31 = sbr.rel (0) target = $region37
  $region36: #{double_conv_nhwc.1} parent=0 // pred_region
    _
  $region37: #{double_conv_nhwc.1} parent=0 // pred_fallthru
    _
  %v33 = vld [vmem:[%s0] sm:$0xf]
  %v34 = vld [vmem:[%s0 + $0x4] sm:$0xf]
  %v35 = vld [vmem:[%s0 + $0x8] sm:$0xf]
  %v36 = vld [vmem:[%s0 + $0xc] sm:$0xf]
  %vm37 = vsmask.f32 256
  %vm38 = vsmask.f32 4368
  %vm39 = vmor %vm37, %vm38
  %v41 = vshrl.u32 %v33, 16
  %v43 = vrot.slane %v41, 7
  %v44 = vshll.u32 %v33, 16
  %v46 = vor.u32 %v43, %v44
  %v47 = vrot.slane %v43, 4
  %v49 = vshrl.u32 %v34, 16
  %v51 = vrot.slane %v49, 7
  %v52 = vshll.u32 %v34, 16
  %v54 = vor.u32 %v51, %v52
  %v55 = vsel %vm39, %v47, %v54
  %v56 = vrot.slane %v51, 4
  %v58 = vshrl.u32 %v35, 16
  %v60 = vrot.slane %v58, 7
  %v61 = vshll.u32 %v35, 16
  %v63 = vor.u32 %v60, %v61
  %v64 = vrot.slane %v60, 4
  %v66 = vshrl.u32 %v36, 16
  %v68 = vrot.slane %v66, 7
  %v69 = vshll.u32 %v36, 16
  %v71 = vor.u32 %v68, %v69
  %v72 = vsel %vm39, %v64, %v71
  %v73 = vrot.slane %v68, 4
  %vm80 = vcmask 1043456
  %vm81 = vsmask.f32 7938
  %vm82 = vmand %vm80, %vm81
  %v83 = vld [vmem:[#allocation2] sm:$0xf]
  %v84 = vsel %vm82, %v46, %v83
  %85 = vst [vmem:[#allocation2] sm:$0xf] %v84
  %86 = vst [vmem:[#allocation2 + $0x4] sm:$0xf] %v55
  %vm87 = vcmask 1040384
  %vm88 = vmand %vm87, %vm37
  %v89 = vld [vmem:[#allocation2 + $0x8] sm:$0x1]
  %v90 = vsel %vm88, %v56, %v89
  %91 = vst [vmem:[#allocation2 + $0x8] sm:$0x1] %v90
  %v92 = vld [vmem:[#allocation2 + $0xc] sm:$0xf]
  %v93 = vsel %vm82, %v63, %v92
  %94 = vst [vmem:[#allocation2 + $0xc] sm:$0xf] %v93
  %95 = vst [vmem:[#allocation2 + $0x10] sm:$0xf] %v72
  %v96 = vld [vmem:[#allocation2 + $0x14] sm:$0x1]
  %v97 = vsel %vm88, %v73, %v96
  %98 = vst [vmem:[#allocation2 + $0x14] sm:$0x1] %v97
  %v99 = vld [vmem:[#allocation2] sm:$0x1]
  %v100 = vsel %vm88, 0, %v99
  %101 = vst [vmem:[#allocation2] sm:$0x1] %v100
  %v102 = vld [vmem:[#allocation2 + $0xc] sm:$0x1]
  %v103 = vsel %vm88, 0, %v102
  %104 = vst [vmem:[#allocation2 + $0xc] sm:$0x1] %v103
  %vm105 = vmand %vm87, %vm81
  %v106 = vld [vmem:[#allocation2 + $0x8] sm:$0x1]
  %v107 = vsel %vm105, 0, %v106
  %108 = vst [vmem:[#allocation2 + $0x8] sm:$0x1] %v107
  %v109 = vld [vmem:[#allocation2 + $0x14] sm:$0x1]
  %v110 = vsel %vm105, 0, %v109
  %111 = vst [vmem:[#allocation2 + $0x14] sm:$0x1] %v110
  %v112 = vld [vmem:[#allocation2] sm:$0xf]
  %v113 = vld [vmem:[#allocation2 + $0x4] sm:$0xf]
  %v114 = vld [vmem:[#allocation2 + $0xc] sm:$0xf]
  %v115 = vld [vmem:[#allocation2 + $0x10] sm:$0xf]
  %v116 = vld [vmem:[#allocation2 + $0x8] sm:$0x1]
  %v117 = vld [vmem:[#allocation2 + $0x14] sm:$0x1]
  %vm118 = vsmask.f32 3328
  %vm119 = vsmask.f32 7440
  %vm120 = vmor %vm118, %vm119
  %v122 = vshrl.u32 %v112, 16
  %v124 = vrot.slane %v122, 4
  %v125 = vshll.u32 %v112, 16
  %v127 = vrot.slane %v125, 5
  %v128 = vor.u32 %v124, %v127
  %v129 = vrot.slane %v128, 4
  %v131 = vshll.u32 %v113, 16
  %v133 = vrot.slane %v131, 5
  %v134 = vsel %vm120, %v129, %v133
  %v135 = vshrl.u32 %v113, 16
  %v137 = vrot.slane %v135, 4
  %v138 = vor.u32 %v137, %v133
  %v139 = vrot.slane %v138, 4
  %v141 = vshll.u32 %v116, 16
  %v143 = vrot.slane %v141, 5
  %v144 = vsel %vm120, %v139, %v143
  %v146 = vshrl.u32 %v114, 16
  %v148 = vrot.slane %v146, 4
  %v149 = vshll.u32 %v114, 16
  %v151 = vrot.slane %v149, 5
  %v152 = vor.u32 %v148, %v151
  %v153 = vrot.slane %v152, 4
  %v155 = vshll.u32 %v115, 16
  %v157 = vrot.slane %v155, 5
  %v158 = vsel %vm120, %v153, %v157
  %v159 = vshrl.u32 %v115, 16
  %v161 = vrot.slane %v159, 4
  %v162 = vor.u32 %v161, %v157
  %v163 = vrot.slane %v162, 4
  %v165 = vshll.u32 %v117, 16
  %v167 = vrot.slane %v165, 5
  %v168 = vsel %vm120, %v163, %v167
  %v169 = vld [vmem:[#allocation2] sm:$0xe]
  %v170 = vld [vmem:[#allocation2 + $0xc] sm:$0xe]
  %vm177 = vcmask 1042432
  %vm178 = vcmask 1046532
  %vm179 = vmor %vm177, %vm178
  %v180 = vrot.slane %v169, 5
  %v181 = vrot.slane %v180, 4
  %v182 = vrot.slane %v113, 5
  %v183 = vsel %vm179, %v181, %v182
  %v184 = vrot.slane %v182, 4
  %v185 = vrot.slane %v116, 5
  %v186 = vsel %vm179, %v184, %v185
  %v187 = vrot.slane %v170, 5
  %v188 = vrot.slane %v187, 4
  %v189 = vrot.slane %v115, 5
  %v190 = vsel %vm179, %v188, %v189
  %v191 = vrot.slane %v189, 4
  %v192 = vrot.slane %v117, 5
  %v193 = vsel %vm179, %v191, %v192
  %v196 = vunpack.c.l.b16 %v112
  %v197 = vunpack.c.l.b16 %v113
  %v198 = vunpack.c.l.b16 %v114
  %v199 = vunpack.c.l.b16 %v115
  %v200 = vpack.c.b16 %v197, %v196
  %v201 = vpack.c.b16 %v199, %v198
  %v204 = vunpack.c.l.b16 %v134
  %v205 = vunpack.c.l.b16 %v144
  %v206 = vunpack.c.l.b16 %v158
  %v207 = vunpack.c.l.b16 %v168
  %v208 = vpack.c.b16 %v205, %v204
  %v209 = vpack.c.b16 %v207, %v206
  %v212 = vunpack.c.l.b16 %v183
  %v213 = vunpack.c.l.b16 %v186
  %v214 = vunpack.c.l.b16 %v190
  %v215 = vunpack.c.l.b16 %v193
  %v216 = vpack.c.b16 %v213, %v212
  %v217 = vpack.c.b16 %v215, %v214
  %v220 = vld [vmem:[%s1] sm:$0xf]
  %v221 = vld [vmem:[%s1 + $0x4] sm:$0xf]
  %v222 = vld [vmem:[%s1 + $0x8] sm:$0xf]
  %v223 = vld [vmem:[%s1 + $0xc] sm:$0xf]
  %v224 = vld [vmem:[%s1 + $0x10] sm:$0xf]
  %v225 = vld [vmem:[%s1 + $0x14] sm:$0xf]
  %v226 = vld [vmem:[%s1 + $0x18] sm:$0xf]
  %v227 = vld [vmem:[%s1 + $0x1c] sm:$0xf]
  %v228 = vld [vmem:[%s1 + $0x20] sm:$0xf]
  %v229 = vld [vmem:[%s1 + $0x24] sm:$0xf]
  %v230 = vld [vmem:[%s1 + $0x28] sm:$0xf]
  %v231 = vld [vmem:[%s1 + $0x2c] sm:$0xf]
  %v232 = vld [vmem:[%s1 + $0x30] sm:$0xf]
  %v233 = vld [vmem:[%s1 + $0x34] sm:$0xf]
  %v234 = vld [vmem:[%s1 + $0x38] sm:$0xf]
  %v235 = vld [vmem:[%s1 + $0x3c] sm:$0xf]
  %v236 = vld [vmem:[%s1 + $0x40] sm:$0xf]
  %v237 = vld [vmem:[%s1 + $0x44] sm:$0xf]
  %v238 = vld [vmem:[%s1 + $0x48] sm:$0xf]
  %v239 = vld [vmem:[%s1 + $0x4c] sm:$0xf]
  %v240 = vld [vmem:[%s1 + $0x50] sm:$0xf]
  %v241 = vld [vmem:[%s1 + $0x54] sm:$0xf]
  %v242 = vld [vmem:[%s1 + $0x58] sm:$0xf]
  %v243 = vld [vmem:[%s1 + $0x5c] sm:$0xf]
  %v244 = vld [vmem:[%s1 + $0x60] sm:$0xf]
  %v245 = vld [vmem:[%s1 + $0x64] sm:$0xf]
  %v246 = vld [vmem:[%s1 + $0x68] sm:$0xf]
  %v247 = vld [vmem:[%s1 + $0x6c] sm:$0xf]
  %v248 = vld [vmem:[%s1 + $0x70] sm:$0xf]
  %v249 = vld [vmem:[%s1 + $0x74] sm:$0xf]
  %v250 = vld [vmem:[%s1 + $0x78] sm:$0xf]
  %v251 = vld [vmem:[%s1 + $0x7c] sm:$0xf]
  %v252 = vld [vmem:[%s1 + $0x80] sm:$0xf]
  %v253 = vld [vmem:[%s1 + $0x84] sm:$0xf]
  %v254 = vld [vmem:[%s1 + $0x88] sm:$0xf]
  %v255 = vld [vmem:[%s1 + $0x8c] sm:$0xf]
  %v256 = vld [vmem:[%s1 + $0x90] sm:$0xf]
  %v257 = vld [vmem:[%s1 + $0x94] sm:$0xf]
  %v258 = vld [vmem:[%s1 + $0x98] sm:$0xf]
  %v259 = vld [vmem:[%s1 + $0x9c] sm:$0xf]
  %v260 = vld [vmem:[%s1 + $0xa0] sm:$0xf]
  %v261 = vld [vmem:[%s1 + $0xa4] sm:$0xf]
  %v262 = vld [vmem:[%s1 + $0xa8] sm:$0xf]
  %v263 = vld [vmem:[%s1 + $0xac] sm:$0xf]
  %v264 = vld [vmem:[%s1 + $0xb0] sm:$0xf]
  %v265 = vld [vmem:[%s1 + $0xb4] sm:$0xf]
  %v266 = vld [vmem:[%s1 + $0xb8] sm:$0xf]
  %v267 = vld [vmem:[%s1 + $0xbc] sm:$0xf]
  %v316 = vunpack.c.l.b16 %v220
  %v317 = vunpack.c.l.b16 %v221
  %v318 = vunpack.c.l.b16 %v222
  %v319 = vunpack.c.l.b16 %v223
  %v320 = vunpack.c.l.b16 %v224
  %v321 = vunpack.c.l.b16 %v225
  %v322 = vunpack.c.l.b16 %v226
  %v323 = vunpack.c.l.b16 %v227
  %v324 = vunpack.c.l.b16 %v228
  %v325 = vunpack.c.l.b16 %v229
  %v326 = vunpack.c.l.b16 %v230
  %v327 = vunpack.c.l.b16 %v231
  %v328 = vunpack.c.l.b16 %v232
  %v329 = vunpack.c.l.b16 %v233
  %v330 = vunpack.c.l.b16 %v234
  %v331 = vunpack.c.l.b16 %v235
  %v332 = vunpack.c.l.b16 %v236
  %v333 = vunpack.c.l.b16 %v237
  %v334 = vunpack.c.l.b16 %v238
  %v335 = vunpack.c.l.b16 %v239
  %v336 = vunpack.c.l.b16 %v240
  %v337 = vunpack.c.l.b16 %v241
  %v338 = vunpack.c.l.b16 %v242
  %v339 = vunpack.c.l.b16 %v243
  %v340 = vunpack.c.l.b16 %v244
  %v341 = vunpack.c.l.b16 %v245
  %v342 = vunpack.c.l.b16 %v246
  %v343 = vunpack.c.l.b16 %v247
  %v344 = vunpack.c.l.b16 %v248
  %v345 = vunpack.c.l.b16 %v249
  %v346 = vunpack.c.l.b16 %v250
  %v347 = vunpack.c.l.b16 %v251
  %v348 = vunpack.c.l.b16 %v252
  %v349 = vunpack.c.l.b16 %v253
  %v350 = vunpack.c.l.b16 %v254
  %v351 = vunpack.c.l.b16 %v255
  %v352 = vunpack.c.l.b16 %v256
  %v353 = vunpack.c.l.b16 %v257
  %v354 = vunpack.c.l.b16 %v258
  %v355 = vunpack.c.l.b16 %v259
  %v356 = vunpack.c.l.b16 %v260
  %v357 = vunpack.c.l.b16 %v261
  %v358 = vunpack.c.l.b16 %v262
  %v359 = vunpack.c.l.b16 %v263
  %v360 = vunpack.c.l.b16 %v264
  %v361 = vunpack.c.l.b16 %v265
  %v362 = vunpack.c.l.b16 %v266
  %v363 = vunpack.c.l.b16 %v267
  %v364 = vpack.c.b16 %v317, %v316
  %v365 = vpack.c.b16 %v319, %v318
  %v366 = vpack.c.b16 %v321, %v320
  %v367 = vpack.c.b16 %v323, %v322
  %v368 = vpack.c.b16 %v325, %v324
  %v369 = vpack.c.b16 %v327, %v326
  %v370 = vpack.c.b16 %v329, %v328
  %v371 = vpack.c.b16 %v331, %v330
  %v372 = vpack.c.b16 %v333, %v332
  %v373 = vpack.c.b16 %v335, %v334
  %v374 = vpack.c.b16 %v337, %v336
  %v375 = vpack.c.b16 %v339, %v338
  %v376 = vpack.c.b16 %v341, %v340
  %v377 = vpack.c.b16 %v343, %v342
  %v378 = vpack.c.b16 %v345, %v344
  %v379 = vpack.c.b16 %v347, %v346
  %v380 = vpack.c.b16 %v349, %v348
  %v381 = vpack.c.b16 %v351, %v350
  %v382 = vpack.c.b16 %v353, %v352
  %v383 = vpack.c.b16 %v355, %v354
  %v384 = vpack.c.b16 %v357, %v356
  %v385 = vpack.c.b16 %v359, %v358
  %v386 = vpack.c.b16 %v361, %v360
  %v387 = vpack.c.b16 %v363, %v362
  %412 = vmatpush.bf16.msra.mxu0 %v371
  %413 = vmatpush.bf16.msra.mxu0 %v370
  %414 = vmatpush.bf16.msra.mxu0 %v369
  %415 = vmatpush.bf16.msra.mxu0 %v368
  %416 = vmatpush.bf16.msra.mxu0 %v367
  %417 = vmatpush.bf16.msra.mxu0 %v366
  %418 = vmatpush.bf16.msra.mxu0 %v365
  %419 = vmatpush.bf16.msra.mxu0 %v364
  %420 = vmatmul.bf16.gmra.mxu0 %v200
  %v421 = vpop.f32.mrf.mxu0
  %v422 = vadd.f32 0.0, %v421
  %v423 = vpop.f32.mrf.mxu0
  %v424 = vadd.f32 0.0, %v423
  %425 = vmatmul.bf16.gmra.mxu0 %v201
  %v426 = vpop.f32.mrf.mxu0
  %v427 = vadd.f32 0.0, %v426
  %v428 = vpop.f32.mrf.mxu0
  %v429 = vadd.f32 0.0, %v428
  %430 = vdwg.mxu0
  %431 = vmatpush.bf16.msra.mxu0 %v379
  %432 = vmatpush.bf16.msra.mxu0 %v378
  %433 = vmatpush.bf16.msra.mxu0 %v377
  %434 = vmatpush.bf16.msra.mxu0 %v376
  %435 = vmatpush.bf16.msra.mxu0 %v375
  %436 = vmatpush.bf16.msra.mxu0 %v374
  %437 = vmatpush.bf16.msra.mxu0 %v373
  %438 = vmatpush.bf16.msra.mxu0 %v372
  %439 = vmatmul.bf16.gmra.mxu0 %v208
  %v440 = vpop.f32.mrf.mxu0
  %v441 = vadd.f32 %v422, %v440
  %v442 = vpop.f32.mrf.mxu0
  %v443 = vadd.f32 %v424, %v442
  %444 = vmatmul.bf16.gmra.mxu0 %v209
  %v445 = vpop.f32.mrf.mxu0
  %v446 = vadd.f32 %v427, %v445
  %v447 = vpop.f32.mrf.mxu0
  %v448 = vadd.f32 %v429, %v447
  %449 = vdwg.mxu0
  %450 = vmatpush.bf16.msra.mxu0 %v387
  %451 = vmatpush.bf16.msra.mxu0 %v386
  %452 = vmatpush.bf16.msra.mxu0 %v385
  %453 = vmatpush.bf16.msra.mxu0 %v384
  %454 = vmatpush.bf16.msra.mxu0 %v383
  %455 = vmatpush.bf16.msra.mxu0 %v382
  %456 = vmatpush.bf16.msra.mxu0 %v381
  %457 = vmatpush.bf16.msra.mxu0 %v380
  %458 = vmatmul.bf16.gmra.mxu0 %v216
  %v459 = vpop.f32.mrf.mxu0
  %v460 = vadd.f32 %v441, %v459
  %v461 = vpop.f32.mrf.mxu0
  %v462 = vadd.f32 %v443, %v461
  %463 = vmatmul.bf16.gmra.mxu0 %v217
  %v464 = vpop.f32.mrf.mxu0
  %v465 = vadd.f32 %v446, %v464
  %v466 = vpop.f32.mrf.mxu0
  %v467 = vadd.f32 %v448, %v466
  %468 = vdwg.mxu0
  %v469 = vadd.f32 %v460, %v462
  %v470 = vadd.f32 %v469, %v465
  %v471 = vadd.f32 %v470, %v467
  %v472 = vrot.slane %v471, 4
  %v473 = vadd.f32 %v471, %v472
  %v474 = vrot.slane %v473, 2
  %v475 = vadd.f32 %v473, %v474
  %v476 = vrot.slane %v475, 1
  %v477 = vadd.f32 %v475, %v476
  %v478 = vmul.f32 %v460, %v460
  %v479 = vmul.f32 %v462, %v462
  %v480 = vmul.f32 %v465, %v465
  %v481 = vmul.f32 %v467, %v467
  %v482 = vadd.f32 %v478, %v479
  %v483 = vadd.f32 %v482, %v480
  %v484 = vadd.f32 %v483, %v481
  %v485 = vrot.slane %v484, 4
  %v486 = vadd.f32 %v484, %v485
  %v487 = vrot.slane %v486, 2
  %v488 = vadd.f32 %v486, %v487
  %v489 = vrot.slane %v488, 1
  %v490 = vadd.f32 %v488, %v489
  %v491 = vld [vmem:[%s2] sm:$0xff]
  %v492 = vld [vmem:[%s2 + $0x8] sm:$0xff]
  %v493 = vld [vmem:[%s2 + $0x10] sm:$0xff]
  %v494 = vld [vmem:[%s2 + $0x18] sm:$0xff]
  %v495 = vld [vmem:[%s2 + $0x20] sm:$0xff]
  %v496 = vld [vmem:[%s2 + $0x28] sm:$0xff]
  %v497 = vld [vmem:[%s2 + $0x30] sm:$0xff]
  %v498 = vld [vmem:[%s2 + $0x38] sm:$0xff]
  %v499 = vld [vmem:[%s2 + $0x40] sm:$0xff]
  %v500 = vld [vmem:[%s2 + $0x48] sm:$0xff]
  %v501 = vld [vmem:[%s2 + $0x50] sm:$0xff]
  %v502 = vld [vmem:[%s2 + $0x58] sm:$0xff]
  %v503 = vld [vmem:[%s2 + $0x60] sm:$0xff]
  %v504 = vld [vmem:[%s2 + $0x68] sm:$0xff]
  %v505 = vld [vmem:[%s2 + $0x70] sm:$0xff]
  %v506 = vld [vmem:[%s2 + $0x78] sm:$0xff]
  %507 = vmatpush.msra.mxu0 %v506
  %508 = vmatpush.msra.mxu0 %v505
  %509 = vmatpush.msra.mxu0 %v504
  %510 = vmatpush.msra.mxu0 %v503
  %511 = vmatpush.msra.mxu0 %v502
  %512 = vmatpush.msra.mxu0 %v501
  %513 = vmatpush.msra.mxu0 %v500
  %514 = vmatpush.msra.mxu0 %v499
  %515 = vmatpush.msra.mxu0 %v498
  %516 = vmatpush.msra.mxu0 %v497
  %517 = vmatpush.msra.mxu0 %v496
  %518 = vmatpush.msra.mxu0 %v495
  %519 = vmatpush.msra.mxu0 %v494
  %520 = vmatpush.msra.mxu0 %v493
  %521 = vmatpush.msra.mxu0 %v492
  %522 = vmatpush.msra.mxu0 %v491
  %523 = vmatmul.f32.gmra.mxu0 %v477
  %v524 = vpop.f32.mrf.mxu0
  %v525 = vadd.f32 0.0, %v524
  %526 = vdwg.mxu0
  %v527 = vmul.f32 %v525, 0.001953125
  %528 = vmatpush.msra.mxu0 %v506
  %529 = vmatpush.msra.mxu0 %v505
  %530 = vmatpush.msra.mxu0 %v504
  %531 = vmatpush.msra.mxu0 %v503
  %532 = vmatpush.msra.mxu0 %v502
  %533 = vmatpush.msra.mxu0 %v501
  %534 = vmatpush.msra.mxu0 %v500
  %535 = vmatpush.msra.mxu0 %v499
  %536 = vmatpush.msra.mxu0 %v498
  %537 = vmatpush.msra.mxu0 %v497
  %538 = vmatpush.msra.mxu0 %v496
  %539 = vmatpush.msra.mxu0 %v495
  %540 = vmatpush.msra.mxu0 %v494
  %541 = vmatpush.msra.mxu0 %v493
  %542 = vmatpush.msra.mxu0 %v492
  %543 = vmatpush.msra.mxu0 %v491
  %544 = vmatmul.f32.gmra.mxu0 %v490
  %v545 = vpop.f32.mrf.mxu0
  %v546 = vadd.f32 0.0, %v545
  %547 = vdwg.mxu0
  %v548 = vmul.f32 %v546, 0.001953125
  %v549 = vmul.f32 %v527, %v527
  %v550 = vsub.f32 %v548, %v549
  %v551 = vmax.f32 %v550, 0.0
  %v552 = vperm.slane %v527, 0
  %v553 = vsub.f32 %v460, %v552
  %v554 = vsub.f32 %v462, %v552
  %v555 = vsub.f32 %v465, %v552
  %v556 = vsub.f32 %v467, %v552
  %v557 = vadd.f32 %v551, 1e-05
  %v558 = vrsqrt.pop %v557
  %v559 = vmul.f32 %v558, %v557
  %v560 = vmul.f32 %v559, %v558
  %v561 = vmul.f32 0.5, %v560
  %v562 = vsub.f32 1.5, %v561
  %v563 = vmul.f32 %v558, %v562
  %vm564 = vweird.f32 %v557
  %vm565 = vweird.f32 %v558
  %vm566 = vmor %vm564, %vm565
  %v567 = vsel %vm566, %v558, %v563
  %v568 = vperm.slane %v567, 0
  %v569 = vmul.f32 %v553, %v568
  %v570 = vmul.f32 %v554, %v568
  %v571 = vmul.f32 %v555, %v568
  %v572 = vmul.f32 %v556, %v568
  %v573 = vld [vmem:[%s3] sm:$0x1]
  %v575 = vperm.slane %v573, 0
  %v577 = vmul.f32 %v569, %v575
  %v578 = vmul.f32 %v570, %v575
  %v579 = vmul.f32 %v571, %v575
  %v580 = vmul.f32 %v572, %v575
  %v581 = vld [vmem:[%s4] sm:$0x1]
  %v583 = vperm.slane %v581, 0
  %v585 = vadd.f32 %v577, %v583
  %v586 = vadd.f32 %v578, %v583
  %v587 = vadd.f32 %v579, %v583
  %v588 = vadd.f32 %v580, %v583
  %v589 = vmax.f32 %v585, 0.0
  %v590 = vmax.f32 %v586, 0.0
  %v591 = vmax.f32 %v587, 0.0
  %v592 = vmax.f32 %v588, 0.0
  %v593 = vpack.c.bf16 %v589, %v589
  %v594 = vpack.c.bf16 %v590, %v590
  %v595 = vpack.c.bf16 %v591, %v591
  %v596 = vpack.c.bf16 %v592, %v592
  %v598 = vshrl.u32 %v593, 16
  %v600 = vrot.slane %v598, 7
  %v601 = vshll.u32 %v593, 16
  %v603 = vor.u32 %v600, %v601
  %v604 = vrot.slane %v600, 4
  %v606 = vshrl.u32 %v594, 16
  %v608 = vrot.slane %v606, 7
  %v609 = vshll.u32 %v594, 16
  %v611 = vor.u32 %v608, %v609
  %v612 = vsel %vm39, %v604, %v611
  %v613 = vrot.slane %v608, 4
  %v615 = vshrl.u32 %v595, 16
  %v617 = vrot.slane %v615, 7
  %v618 = vshll.u32 %v595, 16
  %v620 = vor.u32 %v617, %v618
  %v621 = vrot.slane %v617, 4
  %v623 = vshrl.u32 %v596, 16
  %v625 = vrot.slane %v623, 7
  %v626 = vshll.u32 %v596, 16
  %v628 = vor.u32 %v625, %v626
  %v629 = vsel %vm39, %v621, %v628
  %v630 = vrot.slane %v625, 4
  %v637 = vld [vmem:[#allocation3] sm:$0xf]
  %v638 = vsel %vm82, %v603, %v637
  %639 = vst [vmem:[#allocation3] sm:$0xf] %v638
  %640 = vst [vmem:[#allocation3 + $0x4] sm:$0xf] %v612
  %v641 = vld [vmem:[#allocation3 + $0x8] sm:$0x1]
  %v642 = vsel %vm88, %v613, %v641
  %643 = vst [vmem:[#allocation3 + $0x8] sm:$0x1] %v642
  %v644 = vld [vmem:[#allocation3 + $0xc] sm:$0xf]
  %v645 = vsel %vm82, %v620, %v644
  %646 = vst [vmem:[#allocation3 + $0xc] sm:$0xf] %v645
  %647 = vst [vmem:[#allocation3 + $0x10] sm:$0xf] %v629
  %v648 = vld [vmem:[#allocation3 + $0x14] sm:$0x1]
  %v649 = vsel %vm88, %v630, %v648
  %650 = vst [vmem:[#allocation3 + $0x14] sm:$0x1] %v649
  %v651 = vld [vmem:[#allocation3] sm:$0x1]
  %v652 = vsel %vm88, 0, %v651
  %653 = vst [vmem:[#allocation3] sm:$0x1] %v652
  %v654 = vld [vmem:[#allocation3 + $0xc] sm:$0x1]
  %v655 = vsel %vm88, 0, %v654
  %656 = vst [vmem:[#allocation3 + $0xc] sm:$0x1] %v655
  %v657 = vld [vmem:[#allocation3 + $0x8] sm:$0x1]
  %v658 = vsel %vm105, 0, %v657
  %659 = vst [vmem:[#allocation3 + $0x8] sm:$0x1] %v658
  %v660 = vld [vmem:[#allocation3 + $0x14] sm:$0x1]
  %v661 = vsel %vm105, 0, %v660
  %662 = vst [vmem:[#allocation3 + $0x14] sm:$0x1] %v661
  %v663 = vld [vmem:[#allocation3] sm:$0xf]
  %v664 = vld [vmem:[#allocation3 + $0x4] sm:$0xf]
  %v665 = vld [vmem:[#allocation3 + $0xc] sm:$0xf]
  %v666 = vld [vmem:[#allocation3 + $0x10] sm:$0xf]
  %v667 = vld [vmem:[#allocation3 + $0x8] sm:$0x1]
  %v668 = vld [vmem:[#allocation3 + $0x14] sm:$0x1]
  %v670 = vshrl.u32 %v663, 16
  %v672 = vrot.slane %v670, 4
  %v673 = vshll.u32 %v663, 16
  %v675 = vrot.slane %v673, 5
  %v676 = vor.u32 %v672, %v675
  %v677 = vrot.slane %v676, 4
  %v679 = vshll.u32 %v664, 16
  %v681 = vrot.slane %v679, 5
  %v682 = vsel %vm120, %v677, %v681
  %v683 = vshrl.u32 %v664, 16
  %v685 = vrot.slane %v683, 4
  %v686 = vor.u32 %v685, %v681
  %v687 = vrot.slane %v686, 4
  %v689 = vshll.u32 %v667, 16
  %v691 = vrot.slane %v689, 5
  %v692 = vsel %vm120, %v687, %v691
  %v694 = vshrl.u32 %v665, 16
  %v696 = vrot.slane %v694, 4
  %v697 = vshll.u32 %v665, 16
  %v699 = vrot.slane %v697, 5
  %v700 = vor.u32 %v696, %v699
  %v701 = vrot.slane %v700, 4
  %v703 = vshll.u32 %v666, 16
  %v705 = vrot.slane %v703, 5
  %v706 = vsel %vm120, %v701, %v705
  %v707 = vshrl.u32 %v666, 16
  %v709 = vrot.slane %v707, 4
  %v710 = vor.u32 %v709, %v705
  %v711 = vrot.slane %v710, 4
  %v713 = vshll.u32 %v668, 16
  %v715 = vrot.slane %v713, 5
  %v716 = vsel %vm120, %v711, %v715
  %v717 = vld [vmem:[#allocation3] sm:$0xe]
  %v718 = vld [vmem:[#allocation3 + $0xc] sm:$0xe]
  %v725 = vrot.slane %v717, 5
  %v726 = vrot.slane %v725, 4
  %v727 = vrot.slane %v664, 5
  %v728 = vsel %vm179, %v726, %v727
  %v729 = vrot.slane %v727, 4
  %v730 = vrot.slane %v667, 5
  %v731 = vsel %vm179, %v729, %v730
  %v732 = vrot.slane %v718, 5
  %v733 = vrot.slane %v732, 4
  %v734 = vrot.slane %v666, 5
  %v735 = vsel %vm179, %v733, %v734
  %v736 = vrot.slane %v734, 4
  %v737 = vrot.slane %v668, 5
  %v738 = vsel %vm179, %v736, %v737
  %v741 = vunpack.c.l.b16 %v663
  %v742 = vunpack.c.l.b16 %v664
  %v743 = vunpack.c.l.b16 %v665
  %v744 = vunpack.c.l.b16 %v666
  %v745 = vpack.c.b16 %v742, %v741
  %v746 = vpack.c.b16 %v744, %v743
  %v749 = vunpack.c.l.b16 %v682
  %v750 = vunpack.c.l.b16 %v692
  %v751 = vunpack.c.l.b16 %v706
  %v752 = vunpack.c.l.b16 %v716
  %v753 = vpack.c.b16 %v750, %v749
  %v754 = vpack.c.b16 %v752, %v751
  %v757 = vunpack.c.l.b16 %v728
  %v758 = vunpack.c.l.b16 %v731
  %v759 = vunpack.c.l.b16 %v735
  %v760 = vunpack.c.l.b16 %v738
  %v761 = vpack.c.b16 %v758, %v757
  %v762 = vpack.c.b16 %v760, %v759
  %v765 = vld [vmem:[%s5] sm:$0xf]
  %v766 = vld [vmem:[%s5 + $0x4] sm:$0xf]
  %v767 = vld [vmem:[%s5 + $0x8] sm:$0xf]
  %v768 = vld [vmem:[%s5 + $0xc] sm:$0xf]
  %v769 = vld [vmem:[%s5 + $0x10] sm:$0xf]
  %v770 = vld [vmem:[%s5 + $0x14] sm:$0xf]
  %v771 = vld [vmem:[%s5 + $0x18] sm:$0xf]
  %v772 = vld [vmem:[%s5 + $0x1c] sm:$0xf]
  %v773 = vld [vmem:[%s5 + $0x20] sm:$0xf]
  %v774 = vld [vmem:[%s5 + $0x24] sm:$0xf]
  %v775 = vld [vmem:[%s5 + $0x28] sm:$0xf]
  %v776 = vld [vmem:[%s5 + $0x2c] sm:$0xf]
  %v777 = vld [vmem:[%s5 + $0x30] sm:$0xf]
  %v778 = vld [vmem:[%s5 + $0x34] sm:$0xf]
  %v779 = vld [vmem:[%s5 + $0x38] sm:$0xf]
  %v780 = vld [vmem:[%s5 + $0x3c] sm:$0xf]
  %v781 = vld [vmem:[%s5 + $0x40] sm:$0xf]
  %v782 = vld [vmem:[%s5 + $0x44] sm:$0xf]
  %v783 = vld [vmem:[%s5 + $0x48] sm:$0xf]
  %v784 = vld [vmem:[%s5 + $0x4c] sm:$0xf]
  %v785 = vld [vmem:[%s5 + $0x50] sm:$0xf]
  %v786 = vld [vmem:[%s5 + $0x54] sm:$0xf]
  %v787 = vld [vmem:[%s5 + $0x58] sm:$0xf]
  %v788 = vld [vmem:[%s5 + $0x5c] sm:$0xf]
  %v789 = vld [vmem:[%s5 + $0x60] sm:$0xf]
  %v790 = vld [vmem:[%s5 + $0x64] sm:$0xf]
  %v791 = vld [vmem:[%s5 + $0x68] sm:$0xf]
  %v792 = vld [vmem:[%s5 + $0x6c] sm:$0xf]
  %v793 = vld [vmem:[%s5 + $0x70] sm:$0xf]
  %v794 = vld [vmem:[%s5 + $0x74] sm:$0xf]
  %v795 = vld [vmem:[%s5 + $0x78] sm:$0xf]
  %v796 = vld [vmem:[%s5 + $0x7c] sm:$0xf]
  %v797 = vld [vmem:[%s5 + $0x80] sm:$0xf]
  %v798 = vld [vmem:[%s5 + $0x84] sm:$0xf]
  %v799 = vld [vmem:[%s5 + $0x88] sm:$0xf]
  %v800 = vld [vmem:[%s5 + $0x8c] sm:$0xf]
  %v801 = vld [vmem:[%s5 + $0x90] sm:$0xf]
  %v802 = vld [vmem:[%s5 + $0x94] sm:$0xf]
  %v803 = vld [vmem:[%s5 + $0x98] sm:$0xf]
  %v804 = vld [vmem:[%s5 + $0x9c] sm:$0xf]
  %v805 = vld [vmem:[%s5 + $0xa0] sm:$0xf]
  %v806 = vld [vmem:[%s5 + $0xa4] sm:$0xf]
  %v807 = vld [vmem:[%s5 + $0xa8] sm:$0xf]
  %v808 = vld [vmem:[%s5 + $0xac] sm:$0xf]
  %v809 = vld [vmem:[%s5 + $0xb0] sm:$0xf]
  %v810 = vld [vmem:[%s5 + $0xb4] sm:$0xf]
  %v811 = vld [vmem:[%s5 + $0xb8] sm:$0xf]
  %v812 = vld [vmem:[%s5 + $0xbc] sm:$0xf]
  %v861 = vunpack.c.l.b16 %v765
  %v862 = vunpack.c.l.b16 %v766
  %v863 = vunpack.c.l.b16 %v767
  %v864 = vunpack.c.l.b16 %v768
  %v865 = vunpack.c.l.b16 %v769
  %v866 = vunpack.c.l.b16 %v770
  %v867 = vunpack.c.l.b16 %v771
  %v868 = vunpack.c.l.b16 %v772
  %v869 = vunpack.c.l.b16 %v773
  %v870 = vunpack.c.l.b16 %v774
  %v871 = vunpack.c.l.b16 %v775
  %v872 = vunpack.c.l.b16 %v776
  %v873 = vunpack.c.l.b16 %v777
  %v874 = vunpack.c.l.b16 %v778
  %v875 = vunpack.c.l.b16 %v779
  %v876 = vunpack.c.l.b16 %v780
  %v877 = vunpack.c.l.b16 %v781
  %v878 = vunpack.c.l.b16 %v782
  %v879 = vunpack.c.l.b16 %v783
  %v880 = vunpack.c.l.b16 %v784
  %v881 = vunpack.c.l.b16 %v785
  %v882 = vunpack.c.l.b16 %v786
  %v883 = vunpack.c.l.b16 %v787
  %v884 = vunpack.c.l.b16 %v788
  %v885 = vunpack.c.l.b16 %v789
  %v886 = vunpack.c.l.b16 %v790
  %v887 = vunpack.c.l.b16 %v791
  %v888 = vunpack.c.l.b16 %v792
  %v889 = vunpack.c.l.b16 %v793
  %v890 = vunpack.c.l.b16 %v794
  %v891 = vunpack.c.l.b16 %v795
  %v892 = vunpack.c.l.b16 %v796
  %v893 = vunpack.c.l.b16 %v797
  %v894 = vunpack.c.l.b16 %v798
  %v895 = vunpack.c.l.b16 %v799
  %v896 = vunpack.c.l.b16 %v800
  %v897 = vunpack.c.l.b16 %v801
  %v898 = vunpack.c.l.b16 %v802
  %v899 = vunpack.c.l.b16 %v803
  %v900 = vunpack.c.l.b16 %v804
  %v901 = vunpack.c.l.b16 %v805
  %v902 = vunpack.c.l.b16 %v806
  %v903 = vunpack.c.l.b16 %v807
  %v904 = vunpack.c.l.b16 %v808
  %v905 = vunpack.c.l.b16 %v809
  %v906 = vunpack.c.l.b16 %v810
  %v907 = vunpack.c.l.b16 %v811
  %v908 = vunpack.c.l.b16 %v812
  %v909 = vpack.c.b16 %v862, %v861
  %v910 = vpack.c.b16 %v864, %v863
  %v911 = vpack.c.b16 %v866, %v865
  %v912 = vpack.c.b16 %v868, %v867
  %v913 = vpack.c.b16 %v870, %v869
  %v914 = vpack.c.b16 %v872, %v871
  %v915 = vpack.c.b16 %v874, %v873
  %v916 = vpack.c.b16 %v876, %v875
  %v917 = vpack.c.b16 %v878, %v877
  %v918 = vpack.c.b16 %v880, %v879
  %v919 = vpack.c.b16 %v882, %v881
  %v920 = vpack.c.b16 %v884, %v883
  %v921 = vpack.c.b16 %v886, %v885
  %v922 = vpack.c.b16 %v888, %v887
  %v923 = vpack.c.b16 %v890, %v889
  %v924 = vpack.c.b16 %v892, %v891
  %v925 = vpack.c.b16 %v894, %v893
  %v926 = vpack.c.b16 %v896, %v895
  %v927 = vpack.c.b16 %v898, %v897
  %v928 = vpack.c.b16 %v900, %v899
  %v929 = vpack.c.b16 %v902, %v901
  %v930 = vpack.c.b16 %v904, %v903
  %v931 = vpack.c.b16 %v906, %v905
  %v932 = vpack.c.b16 %v908, %v907
  %957 = vmatpush.bf16.msra.mxu0 %v916
  %958 = vmatpush.bf16.msra.mxu0 %v915
  %959 = vmatpush.bf16.msra.mxu0 %v914
  %960 = vmatpush.bf16.msra.mxu0 %v913
  %961 = vmatpush.bf16.msra.mxu0 %v912
  %962 = vmatpush.bf16.msra.mxu0 %v911
  %963 = vmatpush.bf16.msra.mxu0 %v910
  %964 = vmatpush.bf16.msra.mxu0 %v909
  %965 = vmatmul.bf16.gmra.mxu0 %v745
  %v966 = vpop.f32.mrf.mxu0
  %v967 = vadd.f32 0.0, %v966
  %v968 = vpop.f32.mrf.mxu0
  %v969 = vadd.f32 0.0, %v968
  %970 = vmatmul.bf16.gmra.mxu0 %v746
  %v971 = vpop.f32.mrf.mxu0
  %v972 = vadd.f32 0.0, %v971
  %v973 = vpop.f32.mrf.mxu0
  %v974 = vadd.f32 0.0, %v973
  %975 = vdwg.mxu0
  %976 = vmatpush.bf16.msra.mxu0 %v924
  %977 = vmatpush.bf16.msra.mxu0 %v923
  %978 = vmatpush.bf16.msra.mxu0 %v922
  %979 = vmatpush.bf16.msra.mxu0 %v921
  %980 = vmatpush.bf16.msra.mxu0 %v920
  %981 = vmatpush.bf16.msra.mxu0 %v919
  %982 = vmatpush.bf16.msra.mxu0 %v918
  %983 = vmatpush.bf16.msra.mxu0 %v917
  %984 = vmatmul.bf16.gmra.mxu0 %v753
  %v985 = vpop.f32.mrf.mxu0
  %v986 = vadd.f32 %v967, %v985
  %v987 = vpop.f32.mrf.mxu0
  %v988 = vadd.f32 %v969, %v987
  %989 = vmatmul.bf16.gmra.mxu0 %v754
  %v990 = vpop.f32.mrf.mxu0
  %v991 = vadd.f32 %v972, %v990
  %v992 = vpop.f32.mrf.mxu0
  %v993 = vadd.f32 %v974, %v992
  %994 = vdwg.mxu0
  %995 = vmatpush.bf16.msra.mxu0 %v932
  %996 = vmatpush.bf16.msra.mxu0 %v931
  %997 = vmatpush.bf16.msra.mxu0 %v930
  %998 = vmatpush.bf16.msra.mxu0 %v929
  %999 = vmatpush.bf16.msra.mxu0 %v928
  %1000 = vmatpush.bf16.msra.mxu0 %v927
  %1001 = vmatpush.bf16.msra.mxu0 %v926
  %1002 = vmatpush.bf16.msra.mxu0 %v925
  %1003 = vmatmul.bf16.gmra.mxu0 %v761
  %v1004 = vpop.f32.mrf.mxu0
  %v1005 = vadd.f32 %v986, %v1004
  %v1006 = vpop.f32.mrf.mxu0
  %v1007 = vadd.f32 %v988, %v1006
  %1008 = vmatmul.bf16.gmra.mxu0 %v762
  %v1009 = vpop.f32.mrf.mxu0
  %v1010 = vadd.f32 %v991, %v1009
  %v1011 = vpop.f32.mrf.mxu0
  %v1012 = vadd.f32 %v993, %v1011
  %1013 = vdwg.mxu0
  %v1014 = vadd.f32 %v1005, %v1007
  %v1015 = vadd.f32 %v1014, %v1010
  %v1016 = vadd.f32 %v1015, %v1012
  %v1017 = vrot.slane %v1016, 4
  %v1018 = vadd.f32 %v1016, %v1017
  %v1019 = vrot.slane %v1018, 2
  %v1020 = vadd.f32 %v1018, %v1019
  %v1021 = vrot.slane %v1020, 1
  %v1022 = vadd.f32 %v1020, %v1021
  %v1023 = vmul.f32 %v1005, %v1005
  %v1024 = vmul.f32 %v1007, %v1007
  %v1025 = vmul.f32 %v1010, %v1010
  %v1026 = vmul.f32 %v1012, %v1012
  %v1027 = vadd.f32 %v1023, %v1024
  %v1028 = vadd.f32 %v1027, %v1025
  %v1029 = vadd.f32 %v1028, %v1026
  %v1030 = vrot.slane %v1029, 4
  %v1031 = vadd.f32 %v1029, %v1030
  %v1032 = vrot.slane %v1031, 2
  %v1033 = vadd.f32 %v1031, %v1032
  %v1034 = vrot.slane %v1033, 1
  %v1035 = vadd.f32 %v1033, %v1034
  %v1036 = vld [vmem:[%s6] sm:$0xff]
  %v1037 = vld [vmem:[%s6 + $0x8] sm:$0xff]
  %v1038 = vld [vmem:[%s6 + $0x10] sm:$0xff]
  %v1039 = vld [vmem:[%s6 + $0x18] sm:$0xff]
  %v1040 = vld [vmem:[%s6 + $0x20] sm:$0xff]
  %v1041 = vld [vmem:[%s6 + $0x28] sm:$0xff]
  %v1042 = vld [vmem:[%s6 + $0x30] sm:$0xff]
  %v1043 = vld [vmem:[%s6 + $0x38] sm:$0xff]
  %v1044 = vld [vmem:[%s6 + $0x40] sm:$0xff]
  %v1045 = vld [vmem:[%s6 + $0x48] sm:$0xff]
  %v1046 = vld [vmem:[%s6 + $0x50] sm:$0xff]
  %v1047 = vld [vmem:[%s6 + $0x58] sm:$0xff]
  %v1048 = vld [vmem:[%s6 + $0x60] sm:$0xff]
  %v1049 = vld [vmem:[%s6 + $0x68] sm:$0xff]
  %v1050 = vld [vmem:[%s6 + $0x70] sm:$0xff]
  %v1051 = vld [vmem:[%s6 + $0x78] sm:$0xff]
  %1052 = vmatpush.msra.mxu0 %v1051
  %1053 = vmatpush.msra.mxu0 %v1050
  %1054 = vmatpush.msra.mxu0 %v1049
  %1055 = vmatpush.msra.mxu0 %v1048
  %1056 = vmatpush.msra.mxu0 %v1047
  %1057 = vmatpush.msra.mxu0 %v1046
  %1058 = vmatpush.msra.mxu0 %v1045
  %1059 = vmatpush.msra.mxu0 %v1044
  %1060 = vmatpush.msra.mxu0 %v1043
  %1061 = vmatpush.msra.mxu0 %v1042
  %1062 = vmatpush.msra.mxu0 %v1041
  %1063 = vmatpush.msra.mxu0 %v1040
  %1064 = vmatpush.msra.mxu0 %v1039
  %1065 = vmatpush.msra.mxu0 %v1038
  %1066 = vmatpush.msra.mxu0 %v1037
  %1067 = vmatpush.msra.mxu0 %v1036
  %1068 = vmatmul.f32.gmra.mxu0 %v1022
  %v1069 = vpop.f32.mrf.mxu0
  %v1070 = vadd.f32 0.0, %v1069
  %1071 = vdwg.mxu0
  %v1072 = vmul.f32 %v1070, 0.001953125
  %1073 = vmatpush.msra.mxu0 %v1051
  %1074 = vmatpush.msra.mxu0 %v1050
  %1075 = vmatpush.msra.mxu0 %v1049
  %1076 = vmatpush.msra.mxu0 %v1048
  %1077 = vmatpush.msra.mxu0 %v1047
  %1078 = vmatpush.msra.mxu0 %v1046
  %1079 = vmatpush.msra.mxu0 %v1045
  %1080 = vmatpush.msra.mxu0 %v1044
  %1081 = vmatpush.msra.mxu0 %v1043
  %1082 = vmatpush.msra.mxu0 %v1042
  %1083 = vmatpush.msra.mxu0 %v1041
  %1084 = vmatpush.msra.mxu0 %v1040
  %1085 = vmatpush.msra.mxu0 %v1039
  %1086 = vmatpush.msra.mxu0 %v1038
  %1087 = vmatpush.msra.mxu0 %v1037
  %1088 = vmatpush.msra.mxu0 %v1036
  %1089 = vmatmul.f32.gmra.mxu0 %v1035
  %v1090 = vpop.f32.mrf.mxu0
  %v1091 = vadd.f32 0.0, %v1090
  %1092 = vdwg.mxu0
  %v1093 = vmul.f32 %v1091, 0.001953125
  %v1094 = vmul.f32 %v1072, %v1072
  %v1095 = vsub.f32 %v1093, %v1094
  %v1096 = vmax.f32 %v1095, 0.0
  %v1097 = vperm.slane %v1072, 0
  %v1098 = vsub.f32 %v1005, %v1097
  %v1099 = vsub.f32 %v1007, %v1097
  %v1100 = vsub.f32 %v1010, %v1097
  %v1101 = vsub.f32 %v1012, %v1097
  %v1102 = vadd.f32 %v1096, 1e-05
  %v1103 = vrsqrt.pop %v1102
  %v1104 = vmul.f32 %v1103, %v1102
  %v1105 = vmul.f32 %v1104, %v1103
  %v1106 = vmul.f32 0.5, %v1105
  %v1107 = vsub.f32 1.5, %v1106
  %v1108 = vmul.f32 %v1103, %v1107
  %vm1109 = vweird.f32 %v1102
  %vm1110 = vweird.f32 %v1103
  %vm1111 = vmor %vm1109, %vm1110
  %v1112 = vsel %vm1111, %v1103, %v1108
  %v1113 = vperm.slane %v1112, 0
  %v1114 = vmul.f32 %v1098, %v1113
  %v1115 = vmul.f32 %v1099, %v1113
  %v1116 = vmul.f32 %v1100, %v1113
  %v1117 = vmul.f32 %v1101, %v1113
  %v1118 = vld [vmem:[%s7] sm:$0x1]
  %v1120 = vperm.slane %v1118, 0
  %v1122 = vmul.f32 %v1114, %v1120
  %v1123 = vmul.f32 %v1115, %v1120
  %v1124 = vmul.f32 %v1116, %v1120
  %v1125 = vmul.f32 %v1117, %v1120
  %v1126 = vld [vmem:[%s8] sm:$0x1]
  %v1128 = vperm.slane %v1126, 0
  %v1130 = vadd.f32 %v1122, %v1128
  %v1131 = vadd.f32 %v1123, %v1128
  %v1132 = vadd.f32 %v1124, %v1128
  %v1133 = vadd.f32 %v1125, %v1128
  %v1134 = vmax.f32 %v1130, 0.0
  %v1135 = vmax.f32 %v1131, 0.0
  %v1136 = vmax.f32 %v1132, 0.0
  %v1137 = vmax.f32 %v1133, 0.0
  %v1138 = vpack.c.bf16 %v1134, %v1134
  %v1139 = vpack.c.bf16 %v1135, %v1135
  %v1140 = vpack.c.bf16 %v1136, %v1136
  %v1141 = vpack.c.bf16 %v1137, %v1137
  %1142 = vst [vmem:[%s9] sm:$0xf] %v1138
  %1143 = vst [vmem:[%s9 + $0x4] sm:$0xf] %v1139
  %1144 = vst [vmem:[%s9 + $0x8] sm:$0xf] %v1140
  %1145 = vst [vmem:[%s9 + $0xc] sm:$0xf] %v1141
  // Predicated region
  $region38: #{double_conv_nhwc.1} parent=0 // pred_check
    _
  $region39: #{double_conv_nhwc.1} parent=0 // pred_check_branch
    %1147 = sbr.rel (0) target = $region41
  $region40: #{double_conv_nhwc.1} parent=0 // pred_region
    _
  $region41: #{double_conv_nhwc.1} parent=0 // pred_fallthru
    _
  // Predicated region
  $region42: #{double_conv_nhwc.1} parent=0 // pred_check
    _
  $region43: #{double_conv_nhwc.1} parent=0 // pred_check_branch
    %1149 = sbr.rel (0) target = $region45
  $region44: #{double_conv_nhwc.1} parent=0 // pred_region
    _
  $region45: #{double_conv_nhwc.1} parent=0 // pred_fallthru
    _

</llo_original>
